<compile_context>
chip_gen: v7x
topology: tpu7x:2x2x1
jax: 0.10.0
libtpu: 0.0.40
codegen_flags: <defaults>
</compile_context>

<pallas_src>
import numpy as np

import jax
import jax.numpy as jnp
from jax import lax
from jax.experimental import pallas as pl
from jax.experimental.pallas import tpu as pltpu


# ------------------------- static shape bookkeeping ------------------------- #

def build_meta(cfg, N, H, W):
    n_conv, n_fc = cfg["n_conv"], cfg["n_fc"]
    assert cfg["n_pool"] == n_conv
    layers = []
    Cin, Hin, Win = cfg["in_channels"], H, W
    for i in range(n_conv):
        k, s, p = cfg["kernel_sizes"][i], cfg["strides"][i], cfg["paddings"][i]
        pk, ps = cfg["p_kernels"][i], cfg["p_strides"][i]
        # TODO(synk): conv stride > 1 (H direction) and pool kernels other than
        # 2x2/stride-2 would need different row selection; not needed here.
        assert s == 1 and pk == 2 and ps == 2
        Ho = (Hin + 2 * p - k) // s + 1
        Wo = (Win + 2 * p - k) // s + 1
        assert Wo % 2 == 0, "lane-half W-pool needs even conv output width"
        assert Ho % 2 == 0, "packed row-pair H-pool needs even conv output height"
        Cout = cfg["conv_filters"][i]
        Hp, Wp = Ho // 2, Wo // 2
        layers.append(dict(Cin=Cin, Hin=Hin, Win=Win, k=k, pad=p,
                           Ho=Ho, Wo=Wo, Cout=Cout, Hp=Hp, Wp=Wp))
        Cin, Hin, Win = Cout, Hp, Wp
    assert Cin * Hin * Win == cfg["flat_dim"]
    return dict(N=N, n_conv=n_conv, n_fc=n_fc,
                fc_dims=list(cfg["fc_dims"]), conv=layers)


# -------------------- offline parameter preparation (once) ------------------ #

def _build_banded(w_oihw, b, L):
    """Banded conv weight: rows (kh, w_in, cin), cols [even-w | odd-w] x Cout."""
    Cout, Cin, k, _ = w_oihw.shape
    Win, Wo, Wp, pad = L["Win"], L["Wo"], L["Wp"], L["pad"]
    wb = np.zeros((k, Win * Cin, Wo * Cout), np.float32)
    for w in range(Wo):
        col0 = (w // 2) * Cout + (Wp * Cout if (w % 2) else 0)
        for kw in range(k):
            wi = w - pad + kw                      # stride 1 in W (asserted)
            if 0 <= wi < Win:
                for kh in range(k):
                    wb[kh, wi * Cin:(wi + 1) * Cin, col0:col0 + Cout] = \
                        w_oihw[:, :, kh, kw].T
    wb2d = wb.reshape(k * Win * Cin, Wo * Cout)
    bc = np.tile(b.astype(np.float32), Wo).reshape(1, Wo * Cout)
    return wb2d, bc


def prepare_params(params, cfg, meta):
    prep = {"conv_wb": [], "conv_bc": [], "fc_w": [], "fc_b": []}
    for i, L in enumerate(meta["conv"]):
        wb, bc = _build_banded(np.asarray(params["conv_w"][i], np.float32),
                               np.asarray(params["conv_b"][i], np.float32), L)
        prep["conv_wb"].append(jnp.asarray(wb))
        prep["conv_bc"].append(jnp.asarray(bc))
    # fc1: permute input columns from torch (C, H, W) flatten order to (h, w, c).
    last = meta["conv"][-1]
    F1 = meta["fc_dims"][0]
    w1 = np.asarray(params["fc_w"][0], np.float32)
    w1 = w1.reshape(F1, last["Cout"], last["Hp"], last["Wp"])
    w1 = np.transpose(w1, (2, 3, 1, 0)).reshape(
        last["Hp"] * last["Wp"] * last["Cout"], F1)
    prep["fc_w"].append(jnp.asarray(w1))
    prep["fc_b"].append(jnp.asarray(
        np.asarray(params["fc_b"][0], np.float32).reshape(1, F1)))
    for i in range(1, meta["n_fc"]):
        prep["fc_w"].append(jnp.asarray(np.asarray(params["fc_w"][i], np.float32).T))
        prep["fc_b"].append(jnp.asarray(
            np.asarray(params["fc_b"][i], np.float32).reshape(1, -1)))
    return prep


# ------------------------------ fused Pallas kernel ------------------------- #

def make_fused_kernel(meta):
    N = meta["N"]
    n_conv, n_fc = meta["n_conv"], meta["n_fc"]
    layers = meta["conv"]

    def kernel(*refs):
        x_ref = refs[0]
        conv_refs = refs[1:1 + 2 * n_conv]
        fc_refs = refs[1 + 2 * n_conv:1 + 2 * n_conv + 2 * n_fc]
        out_ref = refs[1 + 2 * n_conv + 2 * n_fc]
        sc = refs[2 + 2 * n_conv + 2 * n_fc:]
        hbufs = sc[:n_conv]                    # per-layer conv output, (N*Ho, Wo*Cout)
        inbufs = sc[n_conv:2 * n_conv - 1]     # padded input scratch for layers 1..
        pbuf = sc[2 * n_conv - 1]              # last pooled, (N*Hp, Wp*Cout)

        cur = x_ref                            # (N, Hin+2*pad, Win*Cin), zero H-border
        for li, L in enumerate(layers):
            wb_ref = conv_refs[2 * li]         # (k*Win*Cin, Wo*Cout)
            bc_ref = conv_refs[2 * li + 1]     # (1, Wo*Cout)
            k, Ho, Hp = L["k"], L["Ho"], L["Hp"]
            WC = L["Win"] * L["Cin"]
            half = L["Wp"] * L["Cout"]
            M, NHp = N * Ho, N * Hp

            # Conv = ONE MXU matmul: read padded input once, lane-concat the
            # kh-shifted views into a (N*Ho, k*Win*Cin) LHS (batch folded in M).
            xv = cur[...]                                          # (N, Hin+2p, WC)
            lhs = jnp.concatenate([xv[:, kh:kh + Ho, :] for kh in range(k)],
                                  axis=-1).reshape(M, k * WC)
            h = jnp.maximum(
                jnp.dot(lhs, wb_ref[...], preferred_element_type=jnp.float32)
                + bc_ref[...], 0.0)                                # bias + ReLU
            hbufs[li][...] = h                                     # dense store

            # LPPool2d(p=2, 2x2, stride 2), VPU + one sqrt on valid rows only:
            #   H: stride-2 sublane reads pick exactly rows (n*Ho+2i, n*Ho+2i+1)
            #      (Ho even => no cross-batch pairs, packed (n, i) order)
            #   W: even-w lane half + odd-w lane half (banded column order)
            top = hbufs[li][pl.ds(0, NHp, stride=2), :]
            bot = hbufs[li][pl.ds(1, NHp, stride=2), :]
            hp2 = top * top + bot * bot                            # (N*Hp, Wo*Cout)
            pooled = jnp.sqrt(hp2[:, 0:half] + hp2[:, half:2 * half])  # (N*Hp, half)

            if li + 1 < n_conv:
                nxt = inbufs[li]               # (N, Hp + 2*pad_next, half)
                pn = layers[li + 1]["pad"]
                if pn > 0:                     # zero the H-border rows
                    z = jnp.zeros((N, pn, half), jnp.float32)
                    nxt[:, 0:pn, :] = z
                    nxt[:, pn + Hp:pn + Hp + pn, :] = z
                nxt[:, pn:pn + Hp, :] = pooled.reshape(N, Hp, half)  # ONE dense store
                cur = nxt
            else:
                pbuf[...] = pooled

        # --------------- fully connected head (batched over N) ---------------- #
        last = layers[-1]
        Hp, half = last["Hp"], last["Wp"] * last["Cout"]
        # Flatten to (N, Hp*Wp*C): row group i of pbuf (rows n*Hp + i) -> lane block i.
        flat = jnp.concatenate([pbuf[pl.ds(i, N, stride=Hp), :] for i in range(Hp)],
                               axis=-1)                            # (N, Hp*Wp*C)
        y = (jnp.dot(flat, fc_refs[0][...], preferred_element_type=jnp.float32)
             + fc_refs[1][...])
        for fi in range(1, n_fc):
            y = jnp.maximum(y, 0.0)
            y = (jnp.dot(y, fc_refs[2 * fi][...], preferred_element_type=jnp.float32)
                 + fc_refs[2 * fi + 1][...])
        out_ref[...] = y                                           # single store
        # TODO(synk): get_activations=True return path, predict()'s softmax,
        # dropout and batch_norm flags are not exercised by this forward
        # (dropout=0.0, batch_norm=False, default args).

    return kernel


# --------------------------------- wrapper ---------------------------------- #

def _cost_estimate(meta, args):
    N = meta["N"]
    flops, trans = 0, 0
    for L in meta["conv"]:
        flops += 2 * (N * L["Ho"]) * (L["k"] * L["Win"] * L["Cin"]) * (L["Wo"] * L["Cout"])
        trans += N * L["Hp"] * L["Wp"] * L["Cout"]        # sqrt per valid pooled elem
    last = meta["conv"][-1]
    dims = [last["Hp"] * last["Wp"] * last["Cout"]] + meta["fc_dims"]
    for i in range(meta["n_fc"]):
        flops += 2 * N * dims[i] * dims[i + 1]
    byts = sum(int(np.prod(a.shape)) * 4 for a in args) + N * meta["fc_dims"][-1] * 4
    return pl.CostEstimate(flops=flops, transcendentals=trans, bytes_accessed=byts)


def convnet_forward(prep, x_nchw, meta):
    N = meta["N"]
    L0 = meta["conv"][0]
    p0 = L0["pad"]
    # NCHW -> (N, H, W*C) rows with C fastest on lanes; zero-pad H only
    # (W padding is folded into the banded weights offline).
    x_rows = jnp.transpose(x_nchw, (0, 2, 3, 1)).reshape(
        N, L0["Hin"], L0["Win"] * L0["Cin"])
    x_rows = jnp.pad(x_rows, ((0, 0), (p0, p0), (0, 0)))

    args = [x_rows]
    for i in range(meta["n_conv"]):
        args += [prep["conv_wb"][i], prep["conv_bc"][i]]
    for i in range(meta["n_fc"]):
        args += [prep["fc_w"][i], prep["fc_b"][i]]

    conv = meta["conv"]
    last = conv[-1]
    scratch = (
        [pltpu.VMEM((N * L["Ho"], L["Wo"] * L["Cout"]), jnp.float32) for L in conv]
        + [pltpu.VMEM((N, conv[i]["Hin"] + 2 * conv[i]["pad"],
                       conv[i]["Win"] * conv[i]["Cin"]), jnp.float32)
           for i in range(1, meta["n_conv"])]
        + [pltpu.VMEM((N * last["Hp"], last["Wp"] * last["Cout"]), jnp.float32)]
    )

    # No grid: at this problem size the kernel is launch/latency bound and the
    # whole working set is a few hundred KiB of VMEM on v5e/v6e/v7x.
    # TODO(synk): for large N, add a batch grid axis with
    # dimension_semantics=("parallel",) (pipelines the input DMA and uses both
    # v7x TensorCores) and set vmem_limit_bytes for the halved v7x VMEM budget.
    out = pl.pallas_call(
        make_fused_kernel(meta),
        out_shape=jax.ShapeDtypeStruct((N, meta["fc_dims"][-1]), jnp.float32),
        scratch_shapes=scratch,
        cost_estimate=_cost_estimate(meta, args),
    )(*args)
    return out


# ----------------------- pure-JAX reference (sanity) ------------------------ #

def reference_forward(params, x_nchw, cfg):
    h = x_nchw
    for i in range(cfg["n_conv"]):
        w, b = params["conv_w"][i], params["conv_b"][i]
        s, p = cfg["strides"][i], cfg["paddings"][i]
        h = lax.conv_general_dilated(
            h, w, (s, s), [(p, p), (p, p)],
            dimension_numbers=("NCHW", "OIHW", "NCHW"),
            precision=lax.Precision.HIGHEST)
        h = jnp.maximum(h + b.reshape(1, -1, 1, 1), 0.0)
        pk, ps = cfg["p_kernels"][i], cfg["p_strides"][i]
        pooled = lax.reduce_window(h * h, 0.0, lax.add,
                                   (1, 1, pk, pk), (1, 1, ps, ps), "VALID")
        h = jnp.sqrt(pooled)
    N = h.shape[0]
    h = h.reshape(N, -1)
    for i in range(cfg["n_fc"] - 1):
        h = jnp.maximum(
            jnp.dot(h, params["fc_w"][i].T, precision=lax.Precision.HIGHEST)
            + params["fc_b"][i], 0.0)
    return (jnp.dot(h, params["fc_w"][-1].T, precision=lax.Precision.HIGHEST)
            + params["fc_b"][-1])


# ----------------------------------- main ------------------------------------ #

if __name__ == "__main__":
    cfg = dict(
        n_conv=2, n_pool=2, n_fc=2,
        conv_filters=[8, 16], kernel_sizes=[3, 3],
        strides=[1, 1], paddings=[1, 1],
        p_kernels=[2, 2], p_strides=[2, 2],
        fc_dims=[32, 10], in_channels=4,
        flat_dim=16 * 4 * 4,   # last conv channels * pooled spatial (4x4)
    )
    N, C, H, W = 2, cfg["in_channels"], 16, 16

    key = jax.random.PRNGKey(0)
    keys = jax.random.split(key, 16)
    params = {"conv_w": [], "conv_b": [], "fc_w": [], "fc_b": []}
    cin = cfg["in_channels"]
    ki = 0
    for i in range(cfg["n_conv"]):
        cout, k = cfg["conv_filters"][i], cfg["kernel_sizes"][i]
        params["conv_w"].append(
            0.1 * jax.random.normal(keys[ki], (cout, cin, k, k), jnp.float32)); ki += 1
        params["conv_b"].append(
            0.1 * jax.random.normal(keys[ki], (cout,), jnp.float32)); ki += 1
        cin = cout
    fin = cfg["flat_dim"]
    for i in range(cfg["n_fc"]):
        fout = cfg["fc_dims"][i]
        params["fc_w"].append(
            0.1 * jax.random.normal(keys[ki], (fout, fin), jnp.float32)); ki += 1
        params["fc_b"].append(
            0.1 * jax.random.normal(keys[ki], (fout,), jnp.float32)); ki += 1
        fin = fout

    x = jax.random.normal(keys[ki], (N, C, H, W), jnp.float32)

    meta = build_meta(cfg, N, H, W)
    prep = prepare_params(params, cfg, meta)      # one-time weight prep

    fwd = jax.jit(lambda p, xin: convnet_forward(p, xin, meta))
    y = jax.block_until_ready(fwd(prep, x))

    y_ref = jax.block_until_ready(reference_forward(params, x, cfg))
    np.testing.assert_allclose(np.asarray(y), np.asarray(y_ref),
                               rtol=5e-2, atol=5e-2)
    assert y.shape == (N, cfg["fc_dims"][-1])

    print("KERNEL_OK")
</pallas_src>

<mosaic_0001>
module attributes {stable_mosaic.version = 11 : i64} {
  func.func @kernel(%arg0: memref<2x18x64xf32, #tpu.memory_space<vmem>>, %arg1: memref<192x128xf32, #tpu.memory_space<vmem>>, %arg2: memref<1x128xf32, #tpu.memory_space<vmem>>, %arg3: memref<192x128xf32, #tpu.memory_space<vmem>>, %arg4: memref<1x128xf32, #tpu.memory_space<vmem>>, %arg5: memref<256x32xf32, #tpu.memory_space<vmem>>, %arg6: memref<1x32xf32, #tpu.memory_space<vmem>>, %arg7: memref<32x10xf32, #tpu.memory_space<vmem>>, %arg8: memref<1x10xf32, #tpu.memory_space<vmem>>, %arg9: memref<2x10xf32, #tpu.memory_space<vmem>>, %arg10: memref<32x128xf32, #tpu.memory_space<vmem>>, %arg11: memref<16x128xf32, #tpu.memory_space<vmem>>, %arg12: memref<2x10x64xf32, #tpu.memory_space<vmem>>, %arg13: memref<8x64xf32, #tpu.memory_space<vmem>>) attributes {dimension_semantics = [], scalar_prefetch = 0 : i64, scratch_operands = 4 : i64, tpu.core_type = #tpu.core_type<tc>} {
    %c0 = arith.constant 0 : index
    %c0_0 = arith.constant 0 : index
    %c0_1 = arith.constant 0 : index
    %0 = vector.load %arg0[%c0, %c0_0, %c0_1] : memref<2x18x64xf32, #tpu.memory_space<vmem>>, vector<2x18x64xf32>
    %1 = vector.extract_strided_slice %0 {offsets = [0, 0, 0], sizes = [2, 16, 64], strides = [1, 1, 1]} : vector<2x18x64xf32> to vector<2x16x64xf32>
    %2 = vector.extract_strided_slice %0 {offsets = [0, 1, 0], sizes = [2, 16, 64], strides = [1, 1, 1]} : vector<2x18x64xf32> to vector<2x16x64xf32>
    %3 = vector.extract_strided_slice %0 {offsets = [0, 2, 0], sizes = [2, 16, 64], strides = [1, 1, 1]} : vector<2x18x64xf32> to vector<2x16x64xf32>
    %4 = tpu.concatenate %1, %2, %3 in 2 : vector<2x16x64xf32>, vector<2x16x64xf32>, vector<2x16x64xf32> -> vector<2x16x192xf32>
    %5 = vector.shape_cast %4 : vector<2x16x192xf32> to vector<32x192xf32>
    %c0_2 = arith.constant 0 : index
    %c0_3 = arith.constant 0 : index
    %6 = vector.load %arg1[%c0_2, %c0_3] : memref<192x128xf32, #tpu.memory_space<vmem>>, vector<192x128xf32>
    %cst = arith.constant dense<0.000000e+00> : vector<32x128xf32>
    %7 = tpu.matmul %5, %6, %cst {dimension_numbers = #tpu.dot_dimension_numbers<[1], [0], [0], [1], [0, 0, 1, 1], [], []>} : vector<32x192xf32>, vector<192x128xf32>, vector<32x128xf32> -> vector<32x128xf32>
    %c0_4 = arith.constant 0 : index
    %c0_5 = arith.constant 0 : index
    %8 = vector.load %arg2[%c0_4, %c0_5] : memref<1x128xf32, #tpu.memory_space<vmem>>, vector<1x128xf32>
    %9 = vector.broadcast %8 : vector<1x128xf32> to vector<32x128xf32>
    %10 = arith.addf %7, %9 : vector<32x128xf32>
    %cst_6 = arith.constant 0.000000e+00 : f32
    %11 = vector.broadcast %cst_6 : f32 to vector<32x128xf32>
    %12 = arith.maximumf %10, %11 : vector<32x128xf32>
    %c0_7 = arith.constant 0 : index
    %c0_8 = arith.constant 0 : index
    %13 = vector.load %arg10[%c0_7, %c0_8] : memref<32x128xf32, #tpu.memory_space<vmem>>, vector<32x128xf32>
    tpu.vector_store %arg10[%c0_7, %c0_8], %12 {strides = array<i32>} : memref<32x128xf32, #tpu.memory_space<vmem>>, vector<32x128xf32>,
    %c0_9 = arith.constant 0 : index
    %c0_10 = arith.constant 0 : index
    %14 = tpu.strided_load %arg10[%c0_9, %c0_10] {strides = array<i32: 2, 1>} : memref<32x128xf32, #tpu.memory_space<vmem>>, vector<16x128xf32>
    %c1 = arith.constant 1 : index
    %c0_11 = arith.constant 0 : index
    %15 = tpu.strided_load %arg10[%c1, %c0_11] {strides = array<i32: 2, 1>} : memref<32x128xf32, #tpu.memory_space<vmem>>, vector<16x128xf32>
    %16 = arith.mulf %14, %14 : vector<16x128xf32>
    %17 = arith.mulf %15, %15 : vector<16x128xf32>
    %18 = arith.addf %16, %17 : vector<16x128xf32>
    %19 = vector.extract_strided_slice %18 {offsets = [0, 0], sizes = [16, 64], strides = [1, 1]} : vector<16x128xf32> to vector<16x64xf32>
    %20 = vector.extract_strided_slice %18 {offsets = [0, 64], sizes = [16, 64], strides = [1, 1]} : vector<16x128xf32> to vector<16x64xf32>
    %21 = arith.addf %19, %20 : vector<16x64xf32>
    %22 = math.sqrt %21 : vector<16x64xf32>
    %cst_12 = arith.constant 0.000000e+00 : f32
    %23 = vector.broadcast %cst_12 : f32 to vector<2x1x64xf32>
    %c0_13 = arith.constant 0 : index
    %c0_14 = arith.constant 0 : index
    %c0_15 = arith.constant 0 : index
    %24 = vector.load %arg12[%c0_13, %c0_14, %c0_15] : memref<2x10x64xf32, #tpu.memory_space<vmem>>, vector<2x1x64xf32>
    tpu.vector_store %arg12[%c0_13, %c0_14, %c0_15], %23 {strides = array<i32>} : memref<2x10x64xf32, #tpu.memory_space<vmem>>, vector<2x1x64xf32>,
    %c0_16 = arith.constant 0 : index
    %c9 = arith.constant 9 : index
    %c0_17 = arith.constant 0 : index
    %25 = vector.load %arg12[%c0_16, %c9, %c0_17] : memref<2x10x64xf32, #tpu.memory_space<vmem>>, vector<2x1x64xf32>
    tpu.vector_store %arg12[%c0_16, %c9, %c0_17], %23 {strides = array<i32>} : memref<2x10x64xf32, #tpu.memory_space<vmem>>, vector<2x1x64xf32>,
    %26 = vector.shape_cast %22 : vector<16x64xf32> to vector<2x8x64xf32>
    %c0_18 = arith.constant 0 : index
    %c1_19 = arith.constant 1 : index
    %c0_20 = arith.constant 0 : index
    %27 = vector.load %arg12[%c0_18, %c1_19, %c0_20] : memref<2x10x64xf32, #tpu.memory_space<vmem>>, vector<2x8x64xf32>
    tpu.vector_store %arg12[%c0_18, %c1_19, %c0_20], %26 {strides = array<i32>} : memref<2x10x64xf32, #tpu.memory_space<vmem>>, vector<2x8x64xf32>,
    %c0_21 = arith.constant 0 : index
    %c0_22 = arith.constant 0 : index
    %c0_23 = arith.constant 0 : index
    %28 = vector.load %arg12[%c0_21, %c0_22, %c0_23] : memref<2x10x64xf32, #tpu.memory_space<vmem>>, vector<2x10x64xf32>
    %29 = vector.extract_strided_slice %28 {offsets = [0, 0, 0], sizes = [2, 8, 64], strides = [1, 1, 1]} : vector<2x10x64xf32> to vector<2x8x64xf32>
    %30 = vector.extract_strided_slice %28 {offsets = [0, 1, 0], sizes = [2, 8, 64], strides = [1, 1, 1]} : vector<2x10x64xf32> to vector<2x8x64xf32>
    %31 = vector.extract_strided_slice %28 {offsets = [0, 2, 0], sizes = [2, 8, 64], strides = [1, 1, 1]} : vector<2x10x64xf32> to vector<2x8x64xf32>
    %32 = tpu.concatenate %29, %30, %31 in 2 : vector<2x8x64xf32>, vector<2x8x64xf32>, vector<2x8x64xf32> -> vector<2x8x192xf32>
    %33 = vector.shape_cast %32 : vector<2x8x192xf32> to vector<16x192xf32>
    %c0_24 = arith.constant 0 : index
    %c0_25 = arith.constant 0 : index
    %34 = vector.load %arg3[%c0_24, %c0_25] : memref<192x128xf32, #tpu.memory_space<vmem>>, vector<192x128xf32>
    %cst_26 = arith.constant dense<0.000000e+00> : vector<16x128xf32>
    %35 = tpu.matmul %33, %34, %cst_26 {dimension_numbers = #tpu.dot_dimension_numbers<[1], [0], [0], [1], [0, 0, 1, 1], [], []>} : vector<16x192xf32>, vector<192x128xf32>, vector<16x128xf32> -> vector<16x128xf32>
    %c0_27 = arith.constant 0 : index
    %c0_28 = arith.constant 0 : index
    %36 = vector.load %arg4[%c0_27, %c0_28] : memref<1x128xf32, #tpu.memory_space<vmem>>, vector<1x128xf32>
    %37 = vector.broadcast %36 : vector<1x128xf32> to vector<16x128xf32>
    %38 = arith.addf %35, %37 : vector<16x128xf32>
    %cst_29 = arith.constant 0.000000e+00 : f32
    %39 = vector.broadcast %cst_29 : f32 to vector<16x128xf32>
    %40 = arith.maximumf %38, %39 : vector<16x128xf32>
    %c0_30 = arith.constant 0 : index
    %c0_31 = arith.constant 0 : index
    %41 = vector.load %arg11[%c0_30, %c0_31] : memref<16x128xf32, #tpu.memory_space<vmem>>, vector<16x128xf32>
    tpu.vector_store %arg11[%c0_30, %c0_31], %40 {strides = array<i32>} : memref<16x128xf32, #tpu.memory_space<vmem>>, vector<16x128xf32>,
    %c0_32 = arith.constant 0 : index
    %c0_33 = arith.constant 0 : index
    %42 = tpu.strided_load %arg11[%c0_32, %c0_33] {strides = array<i32: 2, 1>} : memref<16x128xf32, #tpu.memory_space<vmem>>, vector<8x128xf32>
    %c1_34 = arith.constant 1 : index
    %c0_35 = arith.constant 0 : index
    %43 = tpu.strided_load %arg11[%c1_34, %c0_35] {strides = array<i32: 2, 1>} : memref<16x128xf32, #tpu.memory_space<vmem>>, vector<8x128xf32>
    %44 = arith.mulf %42, %42 : vector<8x128xf32>
    %45 = arith.mulf %43, %43 : vector<8x128xf32>
    %46 = arith.addf %44, %45 : vector<8x128xf32>
    %47 = vector.extract_strided_slice %46 {offsets = [0, 0], sizes = [8, 64], strides = [1, 1]} : vector<8x128xf32> to vector<8x64xf32>
    %48 = vector.extract_strided_slice %46 {offsets = [0, 64], sizes = [8, 64], strides = [1, 1]} : vector<8x128xf32> to vector<8x64xf32>
    %49 = arith.addf %47, %48 : vector<8x64xf32>
    %50 = math.sqrt %49 : vector<8x64xf32>
    %c0_36 = arith.constant 0 : index
    %c0_37 = arith.constant 0 : index
    %51 = vector.load %arg13[%c0_36, %c0_37] : memref<8x64xf32, #tpu.memory_space<vmem>>, vector<8x64xf32>
    tpu.vector_store %arg13[%c0_36, %c0_37], %50 {strides = array<i32>} : memref<8x64xf32, #tpu.memory_space<vmem>>, vector<8x64xf32>,
    %c0_38 = arith.constant 0 : index
    %c0_39 = arith.constant 0 : index
    %52 = tpu.strided_load %arg13[%c0_38, %c0_39] {strides = array<i32: 4, 1>} : memref<8x64xf32, #tpu.memory_space<vmem>>, vector<2x64xf32>
    %c1_40 = arith.constant 1 : index
    %c0_41 = arith.constant 0 : index
    %53 = tpu.strided_load %arg13[%c1_40, %c0_41] {strides = array<i32: 4, 1>} : memref<8x64xf32, #tpu.memory_space<vmem>>, vector<2x64xf32>
    %c2 = arith.constant 2 : index
    %c0_42 = arith.constant 0 : index
    %54 = tpu.strided_load %arg13[%c2, %c0_42] {strides = array<i32: 4, 1>} : memref<8x64xf32, #tpu.memory_space<vmem>>, vector<2x64xf32>
    %c3 = arith.constant 3 : index
    %c0_43 = arith.constant 0 : index
    %55 = tpu.strided_load %arg13[%c3, %c0_43] {strides = array<i32: 4, 1>} : memref<8x64xf32, #tpu.memory_space<vmem>>, vector<2x64xf32>
    %56 = tpu.concatenate %52, %53, %54, %55 in 1 : vector<2x64xf32>, vector<2x64xf32>, vector<2x64xf32>, vector<2x64xf32> -> vector<2x256xf32>
    %c0_44 = arith.constant 0 : index
    %c0_45 = arith.constant 0 : index
    %57 = vector.load %arg5[%c0_44, %c0_45] : memref<256x32xf32, #tpu.memory_space<vmem>>, vector<256x32xf32>
    %cst_46 = arith.constant dense<0.000000e+00> : vector<2x32xf32>
    %58 = tpu.matmul %56, %57, %cst_46 {dimension_numbers = #tpu.dot_dimension_numbers<[1], [0], [0], [1], [0, 0, 1, 1], [], []>} : vector<2x256xf32>, vector<256x32xf32>, vector<2x32xf32> -> vector<2x32xf32>
    %c0_47 = arith.constant 0 : index
    %c0_48 = arith.constant 0 : index
    %59 = vector.load %arg6[%c0_47, %c0_48] : memref<1x32xf32, #tpu.memory_space<vmem>>, vector<1x32xf32>
    %60 = vector.broadcast %59 : vector<1x32xf32> to vector<2x32xf32>
    %61 = arith.addf %58, %60 : vector<2x32xf32>
    %cst_49 = arith.constant 0.000000e+00 : f32
    %62 = vector.broadcast %cst_49 : f32 to vector<2x32xf32>
    %63 = arith.maximumf %61, %62 : vector<2x32xf32>
    %c0_50 = arith.constant 0 : index
    %c0_51 = arith.constant 0 : index
    %64 = vector.load %arg7[%c0_50, %c0_51] : memref<32x10xf32, #tpu.memory_space<vmem>>, vector<32x10xf32>
    %cst_52 = arith.constant dense<0.000000e+00> : vector<2x10xf32>
    %65 = tpu.matmul %63, %64, %cst_52 {dimension_numbers = #tpu.dot_dimension_numbers<[1], [0], [0], [1], [0, 0, 1, 1], [], []>} : vector<2x32xf32>, vector<32x10xf32>, vector<2x10xf32> -> vector<2x10xf32>
    %c0_53 = arith.constant 0 : index
    %c0_54 = arith.constant 0 : index
    %66 = vector.load %arg8[%c0_53, %c0_54] : memref<1x10xf32, #tpu.memory_space<vmem>>, vector<1x10xf32>
    %67 = vector.broadcast %66 : vector<1x10xf32> to vector<2x10xf32>
    %68 = arith.addf %65, %67 : vector<2x10xf32>
    %c0_55 = arith.constant 0 : index
    %c0_56 = arith.constant 0 : index
    %69 = vector.load %arg9[%c0_55, %c0_56] : memref<2x10xf32, #tpu.memory_space<vmem>>, vector<2x10xf32>
    tpu.vector_store %arg9[%c0_55, %c0_56], %68 {strides = array<i32>} : memref<2x10xf32, #tpu.memory_space<vmem>>, vector<2x10xf32>,
    return
  }
}

</mosaic_0001>

<llo_original>
// kernel: _lambda_.1
$region0: #{_lambda_.1}
  #allocation0 [shape = 'u32[]', space=smem, size = 0x4, offset = 0x4, fixed_abs, tag = 'smem constant byte address 0x4 - core index']
  #allocation1 [shape = 'u32[144,128]{1,0:T(1,128)}', space=vmem, size = 0x12000, scoped, tag = 'internal scratch']
  #allocation2 [shape = 'f32[32,128]{1,0:T(8,128)}', space=vmem, size = 0x4000, scoped, tag = 'scratch operand']
  #allocation3 [shape = 'f32[16,128]{1,0:T(8,128)}', space=vmem, size = 0x2000, scoped, tag = 'scratch operand']
  #allocation4 [shape = 'f32[2,10,64]{2,1,0:T(8,128)}', space=vmem, size = 0x4000, scoped, tag = 'scratch operand']
  #allocation5 [shape = 'f32[8,64]{1,0:T(8,128)}', space=vmem, size = 0x1000, scoped, tag = 'scratch operand']
  %s0 = inlined_call_operand.vmem [shape: f32[2,18,64], index: 0, kind: input, shape index: {}]
  %s1 = inlined_call_operand.vmem [shape: f32[192,128], index: 1, kind: input, shape index: {}]
  %s2 = inlined_call_operand.vmem [shape: f32[1,128], index: 2, kind: input, shape index: {}]
  %s3 = inlined_call_operand.vmem [shape: f32[192,128], index: 3, kind: input, shape index: {}]
  %s4 = inlined_call_operand.vmem [shape: f32[1,128], index: 4, kind: input, shape index: {}]
  %s5 = inlined_call_operand.vmem [shape: f32[256,32], index: 5, kind: input, shape index: {}]
  %s6 = inlined_call_operand.vmem [shape: f32[1,32], index: 6, kind: input, shape index: {}]
  %s7 = inlined_call_operand.vmem [shape: f32[32,10], index: 7, kind: input, shape index: {}]
  %s8 = inlined_call_operand.vmem [shape: f32[1,10], index: 8, kind: input, shape index: {}]
  %s9 = inlined_call_operand.hbm [shape: f32[2,10], index: 9, kind: output, shape index: {}]
  %s10 = sld [smem:[#allocation0]]
  $region46: #{_lambda_.1} parent=0
    _
  %s12 = ssub.s32 1, %s10
  %s13 = scalar_select 0, %s12, %s10
  $region1: #{_lambda_.1} parent=0
    #allocation6 [shape = 'u8[1024]{0}', space=vmem, size = 0x400, scoped, tag = 'output window, operand 0, single buffered']
    #allocation7 [shape = 's32[1]{0}', space=sflag, size = 0x4, scoped, tag = 'scoped memory for _lambda_.1']
    %14 = vsyncpa [#allocation7], 0
    // Predicated region
    $region2: #{_lambda_.1} parent=1 // pred_check
      _
    $region3: #{_lambda_.1} parent=1 // pred_check_branch
      %16 = sbr.rel (0) target = $region5
    $region4: #{_lambda_.1} parent=1 // pred_region
      _
    $region5: #{_lambda_.1} parent=1 // pred_fallthru
      _
    // Predicated region
    $region6: #{_lambda_.1} parent=1 // pred_check
      _
    $region7: #{_lambda_.1} parent=1 // pred_check_branch
      %18 = sbr.rel (0) target = $region9
    $region8: #{_lambda_.1} parent=1 // pred_region
      _
    $region9: #{_lambda_.1} parent=1 // pred_fallthru
      _
    // Predicated region
    $region10: #{_lambda_.1} parent=1 // pred_check
      _
    $region11: #{_lambda_.1} parent=1 // pred_check_branch
      %20 = sbr.rel (0) target = $region13
    $region12: #{_lambda_.1} parent=1 // pred_region
      _
    $region13: #{_lambda_.1} parent=1 // pred_fallthru
      _
    // Predicated region
    $region14: #{_lambda_.1} parent=1 // pred_check
      _
    $region15: #{_lambda_.1} parent=1 // pred_check_branch
      %22 = sbr.rel (0) target = $region17
    $region16: #{_lambda_.1} parent=1 // pred_region
      _
    $region17: #{_lambda_.1} parent=1 // pred_fallthru
      _
    // Predicated region
    $region18: #{_lambda_.1} parent=1 // pred_check
      _
    $region19: #{_lambda_.1} parent=1 // pred_check_branch
      %24 = sbr.rel (0) target = $region21
    $region20: #{_lambda_.1} parent=1 // pred_region
      _
    $region21: #{_lambda_.1} parent=1 // pred_fallthru
      _
    // Predicated region
    $region22: #{_lambda_.1} parent=1 // pred_check
      _
    $region23: #{_lambda_.1} parent=1 // pred_check_branch
      %26 = sbr.rel (0) target = $region25
    $region24: #{_lambda_.1} parent=1 // pred_region
      _
    $region25: #{_lambda_.1} parent=1 // pred_fallthru
      _
    // Predicated region
    $region26: #{_lambda_.1} parent=1 // pred_check
      _
    $region27: #{_lambda_.1} parent=1 // pred_check_branch
      %28 = sbr.rel (0) target = $region29
    $region28: #{_lambda_.1} parent=1 // pred_region
      _
    $region29: #{_lambda_.1} parent=1 // pred_fallthru
      _
    // Predicated region
    $region30: #{_lambda_.1} parent=1 // pred_check
      _
    $region31: #{_lambda_.1} parent=1 // pred_check_branch
      %30 = sbr.rel (0) target = $region33
    $region32: #{_lambda_.1} parent=1 // pred_region
      _
    $region33: #{_lambda_.1} parent=1 // pred_fallthru
      _
    // Predicated region
    $region34: #{_lambda_.1} parent=1 // pred_check
      _
    $region35: #{_lambda_.1} parent=1 // pred_check_branch
      %32 = sbr.rel (0) target = $region37
    $region36: #{_lambda_.1} parent=1 // pred_region
      _
    $region37: #{_lambda_.1} parent=1 // pred_fallthru
      _
    %v33 = vld [vmem:[%s0] sm:$0xff]
    %v34 = vld [vmem:[%s0 + $0x8] sm:$0xff]
    %v35 = vld [vmem:[%s0 + $0x10] sm:$0x3]
    %v36 = vld [vmem:[%s0 + $0x18] sm:$0xff]
    %v37 = vld [vmem:[%s0 + $0x20] sm:$0xff]
    %v38 = vld [vmem:[%s0 + $0x28] sm:$0x3]
    %vm45 = vcmask 1046528
    %v46 = vrot.slane %v33, 1
    %v47 = vrot.slane %v34, 1
    %v48 = vsel %vm45, %v46, %v47
    %v49 = vrot.slane %v35, 1
    %v50 = vsel %vm45, %v47, %v49
    %v51 = vrot.slane %v36, 1
    %v52 = vrot.slane %v37, 1
    %v53 = vsel %vm45, %v51, %v52
    %v54 = vrot.slane %v38, 1
    %v55 = vsel %vm45, %v52, %v54
    %56 = vrot.lane.b32.xlu0 %v48, 64
    %v57 = vpop.permute.xlu0 %56
    %58 = vrot.lane.b32.xlu0 %v50, 64
    %v59 = vpop.permute.xlu0 %58
    %60 = vrot.lane.b32.xlu0 %v53, 64
    %v61 = vpop.permute.xlu0 %60
    %62 = vrot.lane.b32.xlu0 %v55, 64
    %v63 = vpop.permute.xlu0 %62
    %vm68 = vcmask 1045504
    %v69 = vrot.slane %v33, 2
    %v70 = vrot.slane %v34, 2
    %v71 = vsel %vm68, %v69, %v70
    %v72 = vrot.slane %v35, 2
    %v73 = vsel %vm68, %v70, %v72
    %v74 = vrot.slane %v36, 2
    %v75 = vrot.slane %v37, 2
    %v76 = vsel %vm68, %v74, %v75
    %v77 = vrot.slane %v38, 2
    %v78 = vsel %vm68, %v75, %v77
    %vm79 = vcmask 523264
    %v80 = vsel %vm79, %v33, %v57
    %v81 = vsel %vm79, %v34, %v59
    %v82 = vsel %vm79, %v36, %v61
    %v83 = vsel %vm79, %v37, %v63
    %v84 = vld [vmem:[%s1] sm:$0xff]
    %v85 = vld [vmem:[%s1 + $0x8] sm:$0xff]
    %v86 = vld [vmem:[%s1 + $0x10] sm:$0xff]
    %v87 = vld [vmem:[%s1 + $0x18] sm:$0xff]
    %v88 = vld [vmem:[%s1 + $0x20] sm:$0xff]
    %v89 = vld [vmem:[%s1 + $0x28] sm:$0xff]
    %v90 = vld [vmem:[%s1 + $0x30] sm:$0xff]
    %v91 = vld [vmem:[%s1 + $0x38] sm:$0xff]
    %v92 = vld [vmem:[%s1 + $0x40] sm:$0xff]
    %v93 = vld [vmem:[%s1 + $0x48] sm:$0xff]
    %v94 = vld [vmem:[%s1 + $0x50] sm:$0xff]
    %v95 = vld [vmem:[%s1 + $0x58] sm:$0xff]
    %v96 = vld [vmem:[%s1 + $0x60] sm:$0xff]
    %v97 = vld [vmem:[%s1 + $0x68] sm:$0xff]
    %v98 = vld [vmem:[%s1 + $0x70] sm:$0xff]
    %v99 = vld [vmem:[%s1 + $0x78] sm:$0xff]
    %v100 = vld [vmem:[%s1 + $0x80] sm:$0xff]
    %v101 = vld [vmem:[%s1 + $0x88] sm:$0xff]
    %v102 = vld [vmem:[%s1 + $0x90] sm:$0xff]
    %v103 = vld [vmem:[%s1 + $0x98] sm:$0xff]
    %v104 = vld [vmem:[%s1 + $0xa0] sm:$0xff]
    %v105 = vld [vmem:[%s1 + $0xa8] sm:$0xff]
    %v106 = vld [vmem:[%s1 + $0xb0] sm:$0xff]
    %v107 = vld [vmem:[%s1 + $0xb8] sm:$0xff]
    %v108 = vld [vmem:[%s2] sm:$0x1]
    %v110 = vlaneseq
    %v111 = vshrl.u32 %v110, 7
    %v112 = vsub.s32 0, %v111
    %v113 = vrot.slane %v108, %v112
    %v115 = vsel %vm79, %v71, 0
    %v117 = vsel %vm79, %v73, 0
    %v119 = vsel %vm79, %v76, 0
    %v121 = vsel %vm79, %v78, 0
    %123 = vmatprep.subr.mxu0 0.0
    %124 = vmatpush1.msra.mxu0 %v84
    %125 = vmatprep.subr.mxu0 0.0
    %126 = vmatpush1.msra.mxu0 %v85
    %127 = vmatprep.subr.mxu0 0.0
    %128 = vmatpush1.msra.mxu0 %v86
    %129 = vmatprep.subr.mxu0 0.0
    %130 = vmatpush1.msra.mxu0 %v87
    %131 = vmatprep.subr.mxu0 0.0
    %132 = vmatpush1.msra.mxu0 %v88
    %133 = vmatprep.subr.mxu0 0.0
    %134 = vmatpush1.msra.mxu0 %v89
    %135 = vmatprep.subr.mxu0 0.0
    %136 = vmatpush1.msra.mxu0 %v90
    %137 = vmatprep.subr.mxu0 0.0
    %138 = vmatpush1.msra.mxu0 %v91
    %139 = vmatprep.subr.mxu0 0.0
    %140 = vmatpush1.msra.mxu0 %v92
    %141 = vmatprep.subr.mxu0 0.0
    %142 = vmatpush1.msra.mxu0 %v93
    %143 = vmatprep.subr.mxu0 0.0
    %144 = vmatpush1.msra.mxu0 %v94
    %145 = vmatprep.subr.mxu0 0.0
    %146 = vmatpush1.msra.mxu0 %v95
    %147 = vmatprep.subr.mxu0 0.0
    %148 = vmatpush1.msra.mxu0 %v96
    %149 = vmatprep.subr.mxu0 0.0
    %150 = vmatpush1.msra.mxu0 %v97
    %151 = vmatprep.subr.mxu0 0.0
    %152 = vmatpush1.msra.mxu0 %v98
    %153 = vmatprep.subr.mxu0 0.0
    %154 = vmatpush1.msra.mxu0 %v99
    %155 = vmatprep.subr.mxu0 0.0
    %156 = vmatpush1.msra.mxu0 %v100
    %157 = vmatprep.subr.mxu0 0.0
    %158 = vmatpush1.msra.mxu0 %v101
    %159 = vmatprep.subr.mxu0 0.0
    %160 = vmatpush1.msra.mxu0 %v102
    %161 = vmatprep.subr.mxu0 0.0
    %162 = vmatpush1.msra.mxu0 %v103
    %163 = vmatprep.subr.mxu0 0.0
    %164 = vmatpush1.msra.mxu0 %v104
    %165 = vmatprep.subr.mxu0 0.0
    %166 = vmatpush1.msra.mxu0 %v105
    %167 = vmatprep.subr.mxu0 0.0
    %168 = vmatpush1.msra.mxu0 %v106
    %169 = vmatprep.subr.mxu0 0.0
    %170 = vmatpush1.msra.mxu0 %v107
    %171 = vmatprep.subr.mxu0 0.0
    %172 = vmatpush1.msra.mxu0 0.0
    %173 = vmatprep.subr.mxu0 0.0
    %174 = vmatpush1.msra.mxu0 0.0
    %175 = vmatprep.subr.mxu0 0.0
    %176 = vmatpush1.msra.mxu0 0.0
    %177 = vmatprep.subr.mxu0 0.0
    %178 = vmatpush1.msra.mxu0 0.0
    %179 = vmatprep.subr.mxu0 0.0
    %180 = vmatpush1.msra.mxu0 0.0
    %181 = vmatprep.subr.mxu0 0.0
    %182 = vmatpush1.msra.mxu0 0.0
    %183 = vmatprep.subr.mxu0 0.0
    %184 = vmatpush1.msra.mxu0 0.0
    %185 = vmatprep.subr.mxu0 0.0
    %186 = vmatpush1.msra.mxu0 0.0
    %187 = vmatprep.mubr.f32.mxu0 %v115
    %188 = vmatmul.mubr.f32.gmra.mrb[0].mxu0 %v80
    %v189 = vpop.f32.mrb[0].mxu0
    %v190 = vadd.f32 %v113, %v189
    %v191 = vpop.f32.mrb[0].mxu0
    %192 = vmatprep.mubr.f32.mxu0 %v117
    %193 = vmatmul.mubr.f32.gmra.mrb[0].mxu0 %v81
    %v194 = vpop.f32.mrb[0].mxu0
    %v195 = vadd.f32 %v113, %v194
    %v196 = vpop.f32.mrb[0].mxu0
    %197 = vmatprep.mubr.f32.mxu0 %v119
    %198 = vmatmul.mubr.f32.gmra.mrb[0].mxu0 %v82
    %v199 = vpop.f32.mrb[0].mxu0
    %v200 = vadd.f32 %v113, %v199
    %v201 = vpop.f32.mrb[0].mxu0
    %202 = vmatprep.mubr.f32.mxu0 %v121
    %203 = vmatmul.mubr.f32.gmra.mrb[0].mxu0 %v83
    %v204 = vpop.f32.mrb[0].mxu0
    %v205 = vadd.f32 %v113, %v204
    %v206 = vpop.f32.mrb[0].mxu0
    %207 = vdwg.mxu0
    %v208 = vmax.f32 %v190, 0.0
    %v209 = vmax.f32 %v195, 0.0
    %v210 = vmax.f32 %v200, 0.0
    %v211 = vmax.f32 %v205, 0.0
    %212 = vst [vmem:[#allocation2] sm:$0xff] %v208
    %213 = vst [vmem:[#allocation2 + $0x8] sm:$0xff] %v209
    %214 = vst [vmem:[#allocation2 + $0x10] sm:$0xff] %v210
    %215 = vst [vmem:[#allocation2 + $0x18] sm:$0xff] %v211
    %v216 = vld [vmem:[#allocation2] ss:$2 sm:$0xff]
    %s217 = scalar_lea.vmem [#allocation2], 16
    %v218 = vld [vmem:[%s217] ss:$2 sm:$0xff]
    %s219 = scalar_lea.vmem [#allocation2], 1
    %v220 = vld [vmem:[%s219] ss:$2 sm:$0xff]
    %s221 = scalar_lea.vmem [#allocation2], 17
    %v222 = vld [vmem:[%s221] ss:$2 sm:$0xff]
    %v223 = vmul.f32 %v216, %v216
    %v224 = vmul.f32 %v218, %v218
    %v225 = vmul.f32 %v220, %v220
    %v226 = vmul.f32 %v222, %v222
    %v227 = vadd.f32 %v223, %v225
    %v228 = vadd.f32 %v224, %v226
    %231 = vrot.lane.b32.xlu0 %v227, 64
    %v232 = vpop.permute.xlu0 %231
    %233 = vrot.lane.b32.xlu0 %v228, 64
    %v234 = vpop.permute.xlu0 %233
    %v237 = vadd.f32 %v227, %v232
    %v238 = vadd.f32 %v228, %v234
    %v239 = vrsqrt.pop %v237
    %v240 = vmul.f32 %v237, %v239
    %vm241 = vcmp.eq.f32.partialorder %v237, inf
    %v242 = vsel %vm241, %v237, %v240
    %vm243 = vcmp.eq.f32.partialorder %v237, 0.0
    %v244 = vand.u32 %v237, 2147483648
    %v245 = vsel %vm243, %v244, %v242
    %v246 = vrsqrt.pop %v238
    %v247 = vmul.f32 %v238, %v246
    %vm248 = vcmp.eq.f32.partialorder %v238, inf
    %v249 = vsel %vm248, %v238, %v247
    %vm250 = vcmp.eq.f32.partialorder %v238, 0.0
    %v251 = vand.u32 %v238, 2147483648
    %v252 = vsel %vm250, %v251, %v249
    %vm253 = vcmask 516096
    %254 = vst.msk [vmem:[#allocation4] sm:$0x1] %vm253, 0.0
    %255 = vst.msk [vmem:[#allocation4 + $0x10] sm:$0x1] %vm253, 0.0
    %256 = vst.msk [vmem:[#allocation4 + $0x9] sm:$0x1] %vm253, 0.0
    %257 = vst.msk [vmem:[#allocation4 + $0x19] sm:$0x1] %vm253, 0.0
    %258 = vst.msk [vmem:[#allocation4 + $0x1] sm:$0xff] %vm79, %v245
    %259 = vst.msk [vmem:[#allocation4 + $0x11] sm:$0xff] %vm79, %v252
    %v260 = vld [vmem:[#allocation4] sm:$0xff]
    %v261 = vld [vmem:[#allocation4 + $0x8] sm:$0x3]
    %v262 = vld [vmem:[#allocation4 + $0x10] sm:$0xff]
    %v263 = vld [vmem:[#allocation4 + $0x18] sm:$0x3]
    %v268 = vrot.slane %v260, 1
    %v269 = vrot.slane %v261, 1
    %v270 = vsel %vm45, %v268, %v269
    %v271 = vrot.slane %v262, 1
    %v272 = vrot.slane %v263, 1
    %v273 = vsel %vm45, %v271, %v272
    %274 = vrot.lane.b32.xlu0 %v270, 64
    %v275 = vpop.permute.xlu0 %274
    %276 = vrot.lane.b32.xlu0 %v273, 64
    %v277 = vpop.permute.xlu0 %276
    %v280 = vrot.slane %v260, 2
    %v281 = vrot.slane %v261, 2
    %v282 = vsel %vm68, %v280, %v281
    %v283 = vrot.slane %v262, 2
    %v284 = vrot.slane %v263, 2
    %v285 = vsel %vm68, %v283, %v284
    %v286 = vsel %vm79, %v260, %v275
    %v287 = vsel %vm79, %v262, %v277
    %v288 = vld [vmem:[%s3] sm:$0xff]
    %v289 = vld [vmem:[%s3 + $0x8] sm:$0xff]
    %v290 = vld [vmem:[%s3 + $0x10] sm:$0xff]
    %v291 = vld [vmem:[%s3 + $0x18] sm:$0xff]
    %v292 = vld [vmem:[%s3 + $0x20] sm:$0xff]
    %v293 = vld [vmem:[%s3 + $0x28] sm:$0xff]
    %v294 = vld [vmem:[%s3 + $0x30] sm:$0xff]
    %v295 = vld [vmem:[%s3 + $0x38] sm:$0xff]
    %v296 = vld [vmem:[%s3 + $0x40] sm:$0xff]
    %v297 = vld [vmem:[%s3 + $0x48] sm:$0xff]
    %v298 = vld [vmem:[%s3 + $0x50] sm:$0xff]
    %v299 = vld [vmem:[%s3 + $0x58] sm:$0xff]
    %v300 = vld [vmem:[%s3 + $0x60] sm:$0xff]
    %v301 = vld [vmem:[%s3 + $0x68] sm:$0xff]
    %v302 = vld [vmem:[%s3 + $0x70] sm:$0xff]
    %v303 = vld [vmem:[%s3 + $0x78] sm:$0xff]
    %v304 = vld [vmem:[%s3 + $0x80] sm:$0xff]
    %v305 = vld [vmem:[%s3 + $0x88] sm:$0xff]
    %v306 = vld [vmem:[%s3 + $0x90] sm:$0xff]
    %v307 = vld [vmem:[%s3 + $0x98] sm:$0xff]
    %v308 = vld [vmem:[%s3 + $0xa0] sm:$0xff]
    %v309 = vld [vmem:[%s3 + $0xa8] sm:$0xff]
    %v310 = vld [vmem:[%s3 + $0xb0] sm:$0xff]
    %v311 = vld [vmem:[%s3 + $0xb8] sm:$0xff]
    %v312 = vld [vmem:[%s4] sm:$0x1]
    %v314 = vlaneseq
    %v315 = vshrl.u32 %v314, 7
    %v316 = vsub.s32 0, %v315
    %v317 = vrot.slane %v312, %v316
    %v319 = vsel %vm79, %v282, 0
    %v321 = vsel %vm79, %v285, 0
    %323 = vmatprep.subr.mxu0 0.0
    %324 = vmatpush1.msra.mxu0 %v288
    %325 = vmatprep.subr.mxu0 0.0
    %326 = vmatpush1.msra.mxu0 %v289
    %327 = vmatprep.subr.mxu0 0.0
    %328 = vmatpush1.msra.mxu0 %v290
    %329 = vmatprep.subr.mxu0 0.0
    %330 = vmatpush1.msra.mxu0 %v291
    %331 = vmatprep.subr.mxu0 0.0
    %332 = vmatpush1.msra.mxu0 %v292
    %333 = vmatprep.subr.mxu0 0.0
    %334 = vmatpush1.msra.mxu0 %v293
    %335 = vmatprep.subr.mxu0 0.0
    %336 = vmatpush1.msra.mxu0 %v294
    %337 = vmatprep.subr.mxu0 0.0
    %338 = vmatpush1.msra.mxu0 %v295
    %339 = vmatprep.subr.mxu0 0.0
    %340 = vmatpush1.msra.mxu0 %v296
    %341 = vmatprep.subr.mxu0 0.0
    %342 = vmatpush1.msra.mxu0 %v297
    %343 = vmatprep.subr.mxu0 0.0
    %344 = vmatpush1.msra.mxu0 %v298
    %345 = vmatprep.subr.mxu0 0.0
    %346 = vmatpush1.msra.mxu0 %v299
    %347 = vmatprep.subr.mxu0 0.0
    %348 = vmatpush1.msra.mxu0 %v300
    %349 = vmatprep.subr.mxu0 0.0
    %350 = vmatpush1.msra.mxu0 %v301
    %351 = vmatprep.subr.mxu0 0.0
    %352 = vmatpush1.msra.mxu0 %v302
    %353 = vmatprep.subr.mxu0 0.0
    %354 = vmatpush1.msra.mxu0 %v303
    %355 = vmatprep.subr.mxu0 0.0
    %356 = vmatpush1.msra.mxu0 %v304
    %357 = vmatprep.subr.mxu0 0.0
    %358 = vmatpush1.msra.mxu0 %v305
    %359 = vmatprep.subr.mxu0 0.0
    %360 = vmatpush1.msra.mxu0 %v306
    %361 = vmatprep.subr.mxu0 0.0
    %362 = vmatpush1.msra.mxu0 %v307
    %363 = vmatprep.subr.mxu0 0.0
    %364 = vmatpush1.msra.mxu0 %v308
    %365 = vmatprep.subr.mxu0 0.0
    %366 = vmatpush1.msra.mxu0 %v309
    %367 = vmatprep.subr.mxu0 0.0
    %368 = vmatpush1.msra.mxu0 %v310
    %369 = vmatprep.subr.mxu0 0.0
    %370 = vmatpush1.msra.mxu0 %v311
    %371 = vmatprep.subr.mxu0 0.0
    %372 = vmatpush1.msra.mxu0 0.0
    %373 = vmatprep.subr.mxu0 0.0
    %374 = vmatpush1.msra.mxu0 0.0
    %375 = vmatprep.subr.mxu0 0.0
    %376 = vmatpush1.msra.mxu0 0.0
    %377 = vmatprep.subr.mxu0 0.0
    %378 = vmatpush1.msra.mxu0 0.0
    %379 = vmatprep.subr.mxu0 0.0
    %380 = vmatpush1.msra.mxu0 0.0
    %381 = vmatprep.subr.mxu0 0.0
    %382 = vmatpush1.msra.mxu0 0.0
    %383 = vmatprep.subr.mxu0 0.0
    %384 = vmatpush1.msra.mxu0 0.0
    %385 = vmatprep.subr.mxu0 0.0
    %386 = vmatpush1.msra.mxu0 0.0
    %387 = vmatprep.mubr.f32.mxu0 %v319
    %388 = vmatmul.mubr.f32.gmra.mrb[0].mxu0 %v286
    %v389 = vpop.f32.mrb[0].mxu0
    %v390 = vadd.f32 %v317, %v389
    %v391 = vpop.f32.mrb[0].mxu0
    %392 = vmatprep.mubr.f32.mxu0 %v321
    %393 = vmatmul.mubr.f32.gmra.mrb[0].mxu0 %v287
    %v394 = vpop.f32.mrb[0].mxu0
    %v395 = vadd.f32 %v317, %v394
    %v396 = vpop.f32.mrb[0].mxu0
    %397 = vdwg.mxu0
    %v398 = vmax.f32 %v390, 0.0
    %v399 = vmax.f32 %v395, 0.0
    %400 = vst [vmem:[#allocation3] sm:$0xff] %v398
    %401 = vst [vmem:[#allocation3 + $0x8] sm:$0xff] %v399
    %v402 = vld [vmem:[#allocation3] ss:$2 sm:$0xff]
    %s403 = scalar_lea.vmem [#allocation3], 1
    %v404 = vld [vmem:[%s403] ss:$2 sm:$0xff]
    %v405 = vmul.f32 %v402, %v402
    %v406 = vmul.f32 %v404, %v404
    %v407 = vadd.f32 %v405, %v406
    %409 = vrot.lane.b32.xlu0 %v407, 64
    %v410 = vpop.permute.xlu0 %409
    %v412 = vadd.f32 %v407, %v410
    %v413 = vrsqrt.pop %v412
    %v414 = vmul.f32 %v412, %v413
    %vm415 = vcmp.eq.f32.partialorder %v412, inf
    %v416 = vsel %vm415, %v412, %v414
    %vm417 = vcmp.eq.f32.partialorder %v412, 0.0
    %v418 = vand.u32 %v412, 2147483648
    %v419 = vsel %vm417, %v418, %v416
    %420 = vst.msk [vmem:[#allocation5] sm:$0xff] %vm79, %v419
    %v421 = vld [vmem:[#allocation5] ss:$4 sm:$0x3]
    %s422 = scalar_lea.vmem [#allocation5], 1
    %v423 = vld [vmem:[%s422] ss:$4 sm:$0x3]
    %s424 = scalar_lea.vmem [#allocation5], 2
    %v425 = vld [vmem:[%s424] ss:$4 sm:$0x3]
    %s426 = scalar_lea.vmem [#allocation5], 3
    %v427 = vld [vmem:[%s426] ss:$4 sm:$0x3]
    %429 = vrot.lane.b32.xlu0 %v423, 64
    %v430 = vpop.permute.xlu0 %429
    %433 = vrot.lane.b32.xlu0 %v427, 64
    %v434 = vpop.permute.xlu0 %433
    %v436 = vsel %vm79, %v421, %v430
    %v437 = vsel %vm79, %v425, %v434
    %v438 = vld [vmem:[%s5] sm:$0xff]
    %v439 = vld [vmem:[%s5 + $0x8] sm:$0xff]
    %v440 = vld [vmem:[%s5 + $0x10] sm:$0xff]
    %v441 = vld [vmem:[%s5 + $0x18] sm:$0xff]
    %v442 = vld [vmem:[%s5 + $0x20] sm:$0xff]
    %v443 = vld [vmem:[%s5 + $0x28] sm:$0xff]
    %v444 = vld [vmem:[%s5 + $0x30] sm:$0xff]
    %v445 = vld [vmem:[%s5 + $0x38] sm:$0xff]
    %v446 = vld [vmem:[%s5 + $0x40] sm:$0xff]
    %v447 = vld [vmem:[%s5 + $0x48] sm:$0xff]
    %v448 = vld [vmem:[%s5 + $0x50] sm:$0xff]
    %v449 = vld [vmem:[%s5 + $0x58] sm:$0xff]
    %v450 = vld [vmem:[%s5 + $0x60] sm:$0xff]
    %v451 = vld [vmem:[%s5 + $0x68] sm:$0xff]
    %v452 = vld [vmem:[%s5 + $0x70] sm:$0xff]
    %v453 = vld [vmem:[%s5 + $0x78] sm:$0xff]
    %v454 = vld [vmem:[%s5 + $0x80] sm:$0xff]
    %v455 = vld [vmem:[%s5 + $0x88] sm:$0xff]
    %v456 = vld [vmem:[%s5 + $0x90] sm:$0xff]
    %v457 = vld [vmem:[%s5 + $0x98] sm:$0xff]
    %v458 = vld [vmem:[%s5 + $0xa0] sm:$0xff]
    %v459 = vld [vmem:[%s5 + $0xa8] sm:$0xff]
    %v460 = vld [vmem:[%s5 + $0xb0] sm:$0xff]
    %v461 = vld [vmem:[%s5 + $0xb8] sm:$0xff]
    %v462 = vld [vmem:[%s5 + $0xc0] sm:$0xff]
    %v463 = vld [vmem:[%s5 + $0xc8] sm:$0xff]
    %v464 = vld [vmem:[%s5 + $0xd0] sm:$0xff]
    %v465 = vld [vmem:[%s5 + $0xd8] sm:$0xff]
    %v466 = vld [vmem:[%s5 + $0xe0] sm:$0xff]
    %v467 = vld [vmem:[%s5 + $0xe8] sm:$0xff]
    %v468 = vld [vmem:[%s5 + $0xf0] sm:$0xff]
    %v469 = vld [vmem:[%s5 + $0xf8] sm:$0xff]
    %v470 = vld [vmem:[%s6] sm:$0x1]
    %v472 = vlaneseq
    %v473 = vshrl.u32 %v472, 7
    %v474 = vsub.s32 0, %v473
    %v475 = vrot.slane %v470, %v474
    %477 = vmatprep.subr.mxu0 0.0
    %478 = vmatpush1.msra.mxu0 %v438
    %479 = vmatprep.subr.mxu0 0.0
    %480 = vmatpush1.msra.mxu0 %v439
    %481 = vmatprep.subr.mxu0 0.0
    %482 = vmatpush1.msra.mxu0 %v440
    %483 = vmatprep.subr.mxu0 0.0
    %484 = vmatpush1.msra.mxu0 %v441
    %485 = vmatprep.subr.mxu0 0.0
    %486 = vmatpush1.msra.mxu0 %v442
    %487 = vmatprep.subr.mxu0 0.0
    %488 = vmatpush1.msra.mxu0 %v443
    %489 = vmatprep.subr.mxu0 0.0
    %490 = vmatpush1.msra.mxu0 %v444
    %491 = vmatprep.subr.mxu0 0.0
    %492 = vmatpush1.msra.mxu0 %v445
    %493 = vmatprep.subr.mxu0 0.0
    %494 = vmatpush1.msra.mxu0 %v446
    %495 = vmatprep.subr.mxu0 0.0
    %496 = vmatpush1.msra.mxu0 %v447
    %497 = vmatprep.subr.mxu0 0.0
    %498 = vmatpush1.msra.mxu0 %v448
    %499 = vmatprep.subr.mxu0 0.0
    %500 = vmatpush1.msra.mxu0 %v449
    %501 = vmatprep.subr.mxu0 0.0
    %502 = vmatpush1.msra.mxu0 %v450
    %503 = vmatprep.subr.mxu0 0.0
    %504 = vmatpush1.msra.mxu0 %v451
    %505 = vmatprep.subr.mxu0 0.0
    %506 = vmatpush1.msra.mxu0 %v452
    %507 = vmatprep.subr.mxu0 0.0
    %508 = vmatpush1.msra.mxu0 %v453
    %509 = vmatprep.subr.mxu0 0.0
    %510 = vmatpush1.msra.mxu0 %v454
    %511 = vmatprep.subr.mxu0 0.0
    %512 = vmatpush1.msra.mxu0 %v455
    %513 = vmatprep.subr.mxu0 0.0
    %514 = vmatpush1.msra.mxu0 %v456
    %515 = vmatprep.subr.mxu0 0.0
    %516 = vmatpush1.msra.mxu0 %v457
    %517 = vmatprep.subr.mxu0 0.0
    %518 = vmatpush1.msra.mxu0 %v458
    %519 = vmatprep.subr.mxu0 0.0
    %520 = vmatpush1.msra.mxu0 %v459
    %521 = vmatprep.subr.mxu0 0.0
    %522 = vmatpush1.msra.mxu0 %v460
    %523 = vmatprep.subr.mxu0 0.0
    %524 = vmatpush1.msra.mxu0 %v461
    %525 = vmatprep.subr.mxu0 0.0
    %526 = vmatpush1.msra.mxu0 %v462
    %527 = vmatprep.subr.mxu0 0.0
    %528 = vmatpush1.msra.mxu0 %v463
    %529 = vmatprep.subr.mxu0 0.0
    %530 = vmatpush1.msra.mxu0 %v464
    %531 = vmatprep.subr.mxu0 0.0
    %532 = vmatpush1.msra.mxu0 %v465
    %533 = vmatprep.subr.mxu0 0.0
    %534 = vmatpush1.msra.mxu0 %v466
    %535 = vmatprep.subr.mxu0 0.0
    %536 = vmatpush1.msra.mxu0 %v467
    %537 = vmatprep.subr.mxu0 0.0
    %538 = vmatpush1.msra.mxu0 %v468
    %539 = vmatprep.subr.mxu0 0.0
    %540 = vmatpush1.msra.mxu0 %v469
    %541 = vmatprep.mubr.f32.mxu0 %v437
    %542 = vmatmul.mubr.f32.gmra.mrb[0].mxu0 %v436
    %v543 = vpop.f32.mrb[0].mxu0
    %v544 = vadd.f32 %v475, %v543
    %v545 = vpop.f32.mrb[0].mxu0
    %546 = vdwg.mxu0
    %v547 = vmax.f32 %v544, 0.0
    %v548 = vld [vmem:[%s7] sm:$0xff]
    %v549 = vld [vmem:[%s7 + $0x8] sm:$0xff]
    %v550 = vld [vmem:[%s7 + $0x10] sm:$0xff]
    %v551 = vld [vmem:[%s7 + $0x18] sm:$0xff]
    %v552 = vld [vmem:[%s8] sm:$0x1]
    %v554 = vlaneseq
    %v555 = vshrl.u32 %v554, 7
    %v556 = vsub.s32 0, %v555
    %v557 = vrot.slane %v552, %v556
    %vm559 = vcmask 261120
    %v561 = vsel %vm559, %v547, 0
    %563 = vmatprep.subr.mxu0 0.0
    %564 = vmatpush1.msra.mxu0 %v548
    %565 = vmatprep.subr.mxu0 0.0
    %566 = vmatpush1.msra.mxu0 %v549
    %567 = vmatprep.subr.mxu0 0.0
    %568 = vmatpush1.msra.mxu0 %v550
    %569 = vmatprep.subr.mxu0 0.0
    %570 = vmatpush1.msra.mxu0 %v551
    %571 = vmatprep.subr.mxu0 0.0
    %572 = vmatpush1.msra.mxu0 0.0
    %573 = vmatprep.subr.mxu0 0.0
    %574 = vmatpush1.msra.mxu0 0.0
    %575 = vmatprep.subr.mxu0 0.0
    %576 = vmatpush1.msra.mxu0 0.0
    %577 = vmatprep.subr.mxu0 0.0
    %578 = vmatpush1.msra.mxu0 0.0
    %579 = vmatprep.subr.mxu0 0.0
    %580 = vmatpush1.msra.mxu0 0.0
    %581 = vmatprep.subr.mxu0 0.0
    %582 = vmatpush1.msra.mxu0 0.0
    %583 = vmatprep.subr.mxu0 0.0
    %584 = vmatpush1.msra.mxu0 0.0
    %585 = vmatprep.subr.mxu0 0.0
    %586 = vmatpush1.msra.mxu0 0.0
    %587 = vmatprep.subr.mxu0 0.0
    %588 = vmatpush1.msra.mxu0 0.0
    %589 = vmatprep.subr.mxu0 0.0
    %590 = vmatpush1.msra.mxu0 0.0
    %591 = vmatprep.subr.mxu0 0.0
    %592 = vmatpush1.msra.mxu0 0.0
    %593 = vmatprep.subr.mxu0 0.0
    %594 = vmatpush1.msra.mxu0 0.0
    %595 = vmatprep.subr.mxu0 0.0
    %596 = vmatpush1.msra.mxu0 0.0
    %597 = vmatprep.subr.mxu0 0.0
    %598 = vmatpush1.msra.mxu0 0.0
    %599 = vmatprep.subr.mxu0 0.0
    %600 = vmatpush1.msra.mxu0 0.0
    %601 = vmatprep.subr.mxu0 0.0
    %602 = vmatpush1.msra.mxu0 0.0
    %603 = vmatprep.subr.mxu0 0.0
    %604 = vmatpush1.msra.mxu0 0.0
    %605 = vmatprep.subr.mxu0 0.0
    %606 = vmatpush1.msra.mxu0 0.0
    %607 = vmatprep.subr.mxu0 0.0
    %608 = vmatpush1.msra.mxu0 0.0
    %609 = vmatprep.subr.mxu0 0.0
    %610 = vmatpush1.msra.mxu0 0.0
    %611 = vmatprep.subr.mxu0 0.0
    %612 = vmatpush1.msra.mxu0 0.0
    %613 = vmatprep.subr.mxu0 0.0
    %614 = vmatpush1.msra.mxu0 0.0
    %615 = vmatprep.subr.mxu0 0.0
    %616 = vmatpush1.msra.mxu0 0.0
    %617 = vmatprep.subr.mxu0 0.0
    %618 = vmatpush1.msra.mxu0 0.0
    %619 = vmatprep.subr.mxu0 0.0
    %620 = vmatpush1.msra.mxu0 0.0
    %621 = vmatprep.subr.mxu0 0.0
    %622 = vmatpush1.msra.mxu0 0.0
    %623 = vmatprep.subr.mxu0 0.0
    %624 = vmatpush1.msra.mxu0 0.0
    %625 = vmatprep.subr.mxu0 0.0
    %626 = vmatpush1.msra.mxu0 0.0
    %627 = vmatprep.mubr.f32.mxu0 0.0
    %628 = vmatmul.mubr.f32.gmra.mrb[0].mxu0 %v561
    %v629 = vpop.f32.mrb[0].mxu0
    %v630 = vadd.f32 %v557, %v629
    %v631 = vpop.f32.mrb[0].mxu0
    %632 = vdwg.mxu0
    %vm633 = vcmask 74752
    %634 = vst.msk [vmem:[#allocation6] sm:$0x3] %vm633, %v630
    // Predicated region
    $region38: #{_lambda_.1} parent=1 // pred_check
      _
    $region39: #{_lambda_.1} parent=1 // pred_check_branch
      %636 = sbr.rel (0) target = $region41
    $region40: #{_lambda_.1} parent=1 // pred_region
      %s638 = ssub.s32 32, 32
      %639 = vsyncadd [#allocation7], %s638
      %s641 = sshll.u32 [#allocation6], 4
      %s642 = int_to_ptr.vmem [resolvable:$true] %s641
      %644 = dma.vmem_to_hbm [thread:$0]  %s642, 32, %s9, [#allocation7]
    $region41: #{_lambda_.1} parent=1 // pred_fallthru
      _
    // Predicated region
    $region42: #{_lambda_.1} parent=1 // pred_check
      _
    $region43: #{_lambda_.1} parent=1 // pred_check_branch
      %646 = sbr.rel (0) target = $region45
    $region44: #{_lambda_.1} parent=1 // pred_region
      %647 = dma.done [#allocation7], 32
    $region45: #{_lambda_.1} parent=1 // pred_fallthru
      _
    %648 = vsyncpa [#allocation7], 1

</llo_original>
